<compile_context>
chip_gen: v7x
topology: tpu7x:2x2x1
jax: 0.10.0
libtpu: 0.0.40
codegen_flags: <defaults>
</compile_context>

<pallas_src>
import jax
import jax.numpy as jnp
from jax import lax
from jax.experimental import pallas as pl
from jax.experimental.pallas import tpu as pltpu

EPS = 1e-5


# ------------------------- host-side static tables -------------------------

def _tap_tables(oh, ow):
    """Boundary masks (zero padding) + static (phase, lane-shift) tables per conv tap."""
    P = oh * ow
    a = jnp.arange(P, dtype=jnp.int32) // ow      # output row index per flat position
    b = jnp.arange(P, dtype=jnp.int32) % ow       # output col index per flat position

    # Stage 1: 4x4 kernel, stride 2, pad 1, applied to the 2x2 stride-phase split.
    m1_rows, tap1 = [], []
    for i in range(4):
        pi, dr = (i + 1) % 2, (i - 1) // 2        # row phase, row offset in phase image
        for j in range(4):
            pj, dc = (j + 1) % 2, (j - 1) // 2
            valid = (a + dr >= 0) & (a + dr < oh) & (b + dc >= 0) & (b + dc < ow)
            m1_rows.append(valid.astype(jnp.float32))
            tap1.append((pi * 2 + pj, (-(dr * ow + dc)) % P))

    # Stage 2: 3x3 kernel, stride 1, pad 1 on the (oh, ow) stage-1 activation.
    m2_rows, tap2 = [], []
    for i in range(3):
        for j in range(3):
            dr, dc = i - 1, j - 1
            valid = (a + dr >= 0) & (a + dr < oh) & (b + dc >= 0) & (b + dc < ow)
            m2_rows.append(valid.astype(jnp.float32))
            tap2.append((-(dr * ow + dc)) % P)

    return jnp.stack(m1_rows), tuple(tap1), jnp.stack(m2_rows), tuple(tap2)


# ------------------------------ Pallas kernel -------------------------------

def _make_fused_kernel(c_in, c_out, tap1, tap2):
    def kernel(xph_ref, w1_ref, b1_ref, m1_ref, w2_ref, b2_ref, m2_ref,
               o_ref, p1_s, p2_s):
        # ---- stage 1: ReLU -> Conv 4x4 / s2 / p1 -> InstanceNorm -> ReLU ----
        xph = jnp.maximum(xph_ref[0], 0.0)                      # (4, c_in, P); input ReLU
        for k, (phase, shift) in enumerate(tap1):               # build (16*c_in, P) patches
            t = xph[phase]                                      # (c_in, P)
            if shift:
                t = pltpu.roll(t, shift, axis=1)                # flat spatial shift (XLU)
            p1_s[k * c_in:(k + 1) * c_in, :] = t * m1_ref[k:k + 1, :]
        y1 = jnp.dot(w1_ref[...], p1_s[...],
                     preferred_element_type=jnp.float32) + b1_ref[...]      # (c_out, P)
        mu1 = jnp.mean(y1, axis=1, keepdims=True)               # per-channel lane reduce
        var1 = jnp.mean(jnp.square(y1 - mu1), axis=1, keepdims=True)
        z1 = jnp.maximum((y1 - mu1) * lax.rsqrt(var1 + EPS), 0.0)  # stays in VMEM

        # ---- stage 2: Conv 3x3 / s1 / p1 -> InstanceNorm ----
        for k, shift in enumerate(tap2):                        # build (9*c_out, P) patches
            t = pltpu.roll(z1, shift, axis=1) if shift else z1
            p2_s[k * c_out:(k + 1) * c_out, :] = t * m2_ref[k:k + 1, :]
        y2 = jnp.dot(w2_ref[...], p2_s[...],
                     preferred_element_type=jnp.float32) + b2_ref[...]      # (c_out, P)
        mu2 = jnp.mean(y2, axis=1, keepdims=True)
        var2 = jnp.mean(jnp.square(y2 - mu2), axis=1, keepdims=True)
        o_ref[0] = (y2 - mu2) * lax.rsqrt(var2 + EPS)           # lane-dense NCHW output
    return kernel


# --------------------------------- wrapper ----------------------------------

@jax.jit
def unet_encoder_block(x_nchw, w1, b1, w2, b2):
    """Pallas implementation of UNetEncoderBlock.forward (default config). NCHW in/out."""
    N, C_in, H, W = x_nchw.shape
    C_out = w1.shape[0]
    assert H % 2 == 0 and W % 2 == 0, "k=4, s=2, p=1 expects even spatial dims"
    oh, ow = H // 2, W // 2
    P = oh * ow

    x = x_nchw.astype(jnp.float32)
    # stride-2 phase split: (N, C, H, W) -> (N, 4, C, oh*ow). Same byte count as x,
    # no im2col expansion, and no pad pass (padding handled by in-kernel masks).
    x_ph = (x.reshape(N, C_in, oh, 2, ow, 2)
              .transpose(0, 3, 5, 1, 2, 4)
              .reshape(N, 4, C_in, P))

    # (C_out, KH*KW*C) weight layout matching the in-kernel (tap, channel) patch rows.
    w1f = jnp.transpose(w1, (0, 2, 3, 1)).reshape(C_out, 16 * C_in).astype(jnp.float32)
    w2f = jnp.transpose(w2, (0, 2, 3, 1)).reshape(C_out, 9 * C_out).astype(jnp.float32)
    b1c = b1.reshape(C_out, 1).astype(jnp.float32)
    b2c = b2.reshape(C_out, 1).astype(jnp.float32)

    m1, tap1, m2, tap2 = _tap_tables(oh, ow)
    kernel = _make_fused_kernel(C_in, C_out, tap1, tap2)

    out_flat = pl.pallas_call(
        kernel,
        out_shape=jax.ShapeDtypeStruct((N, C_out, P), jnp.float32),
        grid=(N,),
        in_specs=[
            pl.BlockSpec((1, 4, C_in, P), lambda n: (n, 0, 0, 0)),   # phase-split sample
            pl.BlockSpec((C_out, 16 * C_in), lambda n: (0, 0)),      # conv1 weight
            pl.BlockSpec((C_out, 1), lambda n: (0, 0)),              # conv1 bias
            pl.BlockSpec((16, P), lambda n: (0, 0)),                 # conv1 pad masks
            pl.BlockSpec((C_out, 9 * C_out), lambda n: (0, 0)),      # conv2 weight
            pl.BlockSpec((C_out, 1), lambda n: (0, 0)),              # conv2 bias
            pl.BlockSpec((9, P), lambda n: (0, 0)),                  # conv2 pad masks
        ],
        out_specs=pl.BlockSpec((1, C_out, P), lambda n: (n, 0, 0)),
        scratch_shapes=[
            pltpu.VMEM((16 * C_in, P), jnp.float32),   # stage-1 patch matrix (in VMEM only)
            pltpu.VMEM((9 * C_out, P), jnp.float32),   # stage-2 patch matrix (in VMEM only)
        ],
        compiler_params=pltpu.CompilerParams(dimension_semantics=("parallel",)),
    )(x_ph, w1f, b1c, m1, w2f, b2c, m2)

    # (N, C_out, oh*ow) is already NCHW order — free metadata reshape, no transpose.
    return out_flat.reshape(N, C_out, oh, ow)


# --------------------------- pure-JAX reference -----------------------------

def _instance_norm_nchw(x):
    mean = jnp.mean(x, axis=(2, 3), keepdims=True)
    var = jnp.mean(jnp.square(x - mean), axis=(2, 3), keepdims=True)
    return (x - mean) * lax.rsqrt(var + EPS)


def reference_forward(x, w1, b1, w2, b2):
    dn = ("NCHW", "OIHW", "NCHW")
    h = jnp.maximum(x, 0.0)
    h = lax.conv_general_dilated(h, w1, (2, 2), ((1, 1), (1, 1)), dimension_numbers=dn)
    h = h + b1[None, :, None, None]
    h = _instance_norm_nchw(h)
    h = jnp.maximum(h, 0.0)
    h = lax.conv_general_dilated(h, w2, (1, 1), ((1, 1), (1, 1)), dimension_numbers=dn)
    h = h + b2[None, :, None, None]
    return _instance_norm_nchw(h)


# ---------------------------------- main ------------------------------------

if __name__ == "__main__":
    key = jax.random.PRNGKey(0)
    k_x, k_w1, k_b1, k_w2, k_b2 = jax.random.split(key, 5)

    N, C_in, C_out, H, W = 2, 4, 8, 16, 16

    x = jax.random.normal(k_x, (N, C_in, H, W), dtype=jnp.float32)
    # Conv2d(c_in, c_out, 4): weight (C_out, C_in, 4, 4), bias (C_out,)
    w1 = 0.1 * jax.random.normal(k_w1, (C_out, C_in, 4, 4), dtype=jnp.float32)
    b1 = 0.1 * jax.random.normal(k_b1, (C_out,), dtype=jnp.float32)
    # Conv2d(c_out, c_out, 3): weight (C_out, C_out, 3, 3), bias (C_out,)
    w2 = 0.1 * jax.random.normal(k_w2, (C_out, C_out, 3, 3), dtype=jnp.float32)
    b2 = 0.1 * jax.random.normal(k_b2, (C_out,), dtype=jnp.float32)

    out = jax.block_until_ready(unet_encoder_block(x, w1, b1, w2, b2))
    ref = jax.block_until_ready(reference_forward(x, w1, b1, w2, b2))

    assert out.shape == (N, C_out, H // 2, W // 2), out.shape
    err = float(jnp.max(jnp.abs(out - ref)))
    assert jnp.allclose(out, ref, atol=1e-4, rtol=1e-4), err

    print("KERNEL_OK")
</pallas_src>

<mosaic_0001>
module attributes {stable_mosaic.version = 11 : i64} {
  func.func @kernel(%arg0: i32, %arg1: memref<1x4x4x64xf32, #tpu.memory_space<vmem>>, %arg2: memref<8x64xf32, #tpu.memory_space<vmem>>, %arg3: memref<8x1xf32, #tpu.memory_space<vmem>>, %arg4: memref<16x64xf32, #tpu.memory_space<vmem>>, %arg5: memref<8x72xf32, #tpu.memory_space<vmem>>, %arg6: memref<8x1xf32, #tpu.memory_space<vmem>>, %arg7: memref<9x64xf32, #tpu.memory_space<vmem>>, %arg8: memref<1x8x64xf32, #tpu.memory_space<vmem>>, %arg9: memref<64x64xf32, #tpu.memory_space<vmem>>, %arg10: memref<72x64xf32, #tpu.memory_space<vmem>>) attributes {dimension_semantics = [#tpu.dimension_semantics<parallel>], iteration_bounds = array<i64: 2>, scalar_prefetch = 0 : i64, scratch_operands = 2 : i64, tpu.core_type = #tpu.core_type<tc>, window_params = [{transform_indices = @transform_0, window_bounds = array<i64: 1, 4, 4, 64>}, {pipeline_mode = #tpu.pipeline_mode<synchronous>, transform_indices = @transform_1, window_bounds = array<i64: 8, 64>}, {pipeline_mode = #tpu.pipeline_mode<synchronous>, transform_indices = @transform_2, window_bounds = array<i64: 8, 1>}, {pipeline_mode = #tpu.pipeline_mode<synchronous>, transform_indices = @transform_3, window_bounds = array<i64: 16, 64>}, {pipeline_mode = #tpu.pipeline_mode<synchronous>, transform_indices = @transform_4, window_bounds = array<i64: 8, 72>}, {pipeline_mode = #tpu.pipeline_mode<synchronous>, transform_indices = @transform_5, window_bounds = array<i64: 8, 1>}, {pipeline_mode = #tpu.pipeline_mode<synchronous>, transform_indices = @transform_6, window_bounds = array<i64: 9, 64>}, {transform_indices = @transform_7, window_bounds = array<i64: 1, 8, 64>}]} {
    %c0 = arith.constant 0 : index
    %c0_0 = arith.constant 0 : index
    %c0_1 = arith.constant 0 : index
    %c0_2 = arith.constant 0 : index
    %0 = vector.load %arg1[%c0, %c0_0, %c0_1, %c0_2] : memref<1x4x4x64xf32, #tpu.memory_space<vmem>>, vector<1x4x4x64xf32>
    %1 = vector.shape_cast %0 : vector<1x4x4x64xf32> to vector<4x4x64xf32>
    %cst = arith.constant 0.000000e+00 : f32
    %2 = vector.broadcast %cst : f32 to vector<4x4x64xf32>
    %3 = arith.maximumf %1, %2 : vector<4x4x64xf32>
    %4 = vector.extract_strided_slice %3 {offsets = [3, 0, 0], sizes = [1, 4, 64], strides = [1, 1, 1]} : vector<4x4x64xf32> to vector<1x4x64xf32>
    %5 = vector.shape_cast %4 : vector<1x4x64xf32> to vector<4x64xf32>
    %c9_i32 = arith.constant 9 : i32
    %6 = tpu.dynamic_rotate %5 by %c9_i32 dim 1 : vector<4x64xf32>, i32 -> vector<4x64xf32>
    %c0_3 = arith.constant 0 : index
    %c0_4 = arith.constant 0 : index
    %7 = vector.load %arg4[%c0_3, %c0_4] : memref<16x64xf32, #tpu.memory_space<vmem>>, vector<1x64xf32>
    %8 = vector.broadcast %7 : vector<1x64xf32> to vector<4x64xf32>
    %9 = arith.mulf %6, %8 : vector<4x64xf32>
    %c0_5 = arith.constant 0 : index
    %c0_6 = arith.constant 0 : index
    %10 = vector.load %arg9[%c0_5, %c0_6] : memref<64x64xf32, #tpu.memory_space<vmem>>, vector<4x64xf32>
    tpu.vector_store %arg9[%c0_5, %c0_6], %9 {strides = array<i32>} : memref<64x64xf32, #tpu.memory_space<vmem>>, vector<4x64xf32>,
    %11 = vector.extract_strided_slice %3 {offsets = [2, 0, 0], sizes = [1, 4, 64], strides = [1, 1, 1]} : vector<4x4x64xf32> to vector<1x4x64xf32>
    %12 = vector.shape_cast %11 : vector<1x4x64xf32> to vector<4x64xf32>
    %c8_i32 = arith.constant 8 : i32
    %13 = tpu.dynamic_rotate %12 by %c8_i32 dim 1 : vector<4x64xf32>, i32 -> vector<4x64xf32>
    %c1 = arith.constant 1 : index
    %c0_7 = arith.constant 0 : index
    %14 = vector.load %arg4[%c1, %c0_7] : memref<16x64xf32, #tpu.memory_space<vmem>>, vector<1x64xf32>
    %15 = vector.broadcast %14 : vector<1x64xf32> to vector<4x64xf32>
    %16 = arith.mulf %13, %15 : vector<4x64xf32>
    %c4 = arith.constant 4 : index
    %c0_8 = arith.constant 0 : index
    %17 = vector.load %arg9[%c4, %c0_8] : memref<64x64xf32, #tpu.memory_space<vmem>>, vector<4x64xf32>
    tpu.vector_store %arg9[%c4, %c0_8], %16 {strides = array<i32>} : memref<64x64xf32, #tpu.memory_space<vmem>>, vector<4x64xf32>,
    %18 = vector.extract_strided_slice %3 {offsets = [3, 0, 0], sizes = [1, 4, 64], strides = [1, 1, 1]} : vector<4x4x64xf32> to vector<1x4x64xf32>
    %19 = vector.shape_cast %18 : vector<1x4x64xf32> to vector<4x64xf32>
    %c8_i32_9 = arith.constant 8 : i32
    %20 = tpu.dynamic_rotate %19 by %c8_i32_9 dim 1 : vector<4x64xf32>, i32 -> vector<4x64xf32>
    %c2 = arith.constant 2 : index
    %c0_10 = arith.constant 0 : index
    %21 = vector.load %arg4[%c2, %c0_10] : memref<16x64xf32, #tpu.memory_space<vmem>>, vector<1x64xf32>
    %22 = vector.broadcast %21 : vector<1x64xf32> to vector<4x64xf32>
    %23 = arith.mulf %20, %22 : vector<4x64xf32>
    %c8 = arith.constant 8 : index
    %c0_11 = arith.constant 0 : index
    %24 = vector.load %arg9[%c8, %c0_11] : memref<64x64xf32, #tpu.memory_space<vmem>>, vector<4x64xf32>
    tpu.vector_store %arg9[%c8, %c0_11], %23 {strides = array<i32>} : memref<64x64xf32, #tpu.memory_space<vmem>>, vector<4x64xf32>,
    %25 = vector.extract_strided_slice %3 {offsets = [2, 0, 0], sizes = [1, 4, 64], strides = [1, 1, 1]} : vector<4x4x64xf32> to vector<1x4x64xf32>
    %26 = vector.shape_cast %25 : vector<1x4x64xf32> to vector<4x64xf32>
    %c7_i32 = arith.constant 7 : i32
    %27 = tpu.dynamic_rotate %26 by %c7_i32 dim 1 : vector<4x64xf32>, i32 -> vector<4x64xf32>
    %c3 = arith.constant 3 : index
    %c0_12 = arith.constant 0 : index
    %28 = vector.load %arg4[%c3, %c0_12] : memref<16x64xf32, #tpu.memory_space<vmem>>, vector<1x64xf32>
    %29 = vector.broadcast %28 : vector<1x64xf32> to vector<4x64xf32>
    %30 = arith.mulf %27, %29 : vector<4x64xf32>
    %c12 = arith.constant 12 : index
    %c0_13 = arith.constant 0 : index
    %31 = vector.load %arg9[%c12, %c0_13] : memref<64x64xf32, #tpu.memory_space<vmem>>, vector<4x64xf32>
    tpu.vector_store %arg9[%c12, %c0_13], %30 {strides = array<i32>} : memref<64x64xf32, #tpu.memory_space<vmem>>, vector<4x64xf32>,
    %32 = vector.extract_strided_slice %3 {offsets = [1, 0, 0], sizes = [1, 4, 64], strides = [1, 1, 1]} : vector<4x4x64xf32> to vector<1x4x64xf32>
    %33 = vector.shape_cast %32 : vector<1x4x64xf32> to vector<4x64xf32>
    %c1_i32 = arith.constant 1 : i32
    %34 = tpu.dynamic_rotate %33 by %c1_i32 dim 1 : vector<4x64xf32>, i32 -> vector<4x64xf32>
    %c4_14 = arith.constant 4 : index
    %c0_15 = arith.constant 0 : index
    %35 = vector.load %arg4[%c4_14, %c0_15] : memref<16x64xf32, #tpu.memory_space<vmem>>, vector<1x64xf32>
    %36 = vector.broadcast %35 : vector<1x64xf32> to vector<4x64xf32>
    %37 = arith.mulf %34, %36 : vector<4x64xf32>
    %c16 = arith.constant 16 : index
    %c0_16 = arith.constant 0 : index
    %38 = vector.load %arg9[%c16, %c0_16] : memref<64x64xf32, #tpu.memory_space<vmem>>, vector<4x64xf32>
    tpu.vector_store %arg9[%c16, %c0_16], %37 {strides = array<i32>} : memref<64x64xf32, #tpu.memory_space<vmem>>, vector<4x64xf32>,
    %39 = vector.extract_strided_slice %3 {offsets = [0, 0, 0], sizes = [1, 4, 64], strides = [1, 1, 1]} : vector<4x4x64xf32> to vector<1x4x64xf32>
    %40 = vector.shape_cast %39 : vector<1x4x64xf32> to vector<4x64xf32>
    %c5 = arith.constant 5 : index
    %c0_17 = arith.constant 0 : index
    %41 = vector.load %arg4[%c5, %c0_17] : memref<16x64xf32, #tpu.memory_space<vmem>>, vector<1x64xf32>
    %42 = vector.broadcast %41 : vector<1x64xf32> to vector<4x64xf32>
    %43 = arith.mulf %40, %42 : vector<4x64xf32>
    %c20 = arith.constant 20 : index
    %c0_18 = arith.constant 0 : index
    %44 = vector.load %arg9[%c20, %c0_18] : memref<64x64xf32, #tpu.memory_space<vmem>>, vector<4x64xf32>
    tpu.vector_store %arg9[%c20, %c0_18], %43 {strides = array<i32>} : memref<64x64xf32, #tpu.memory_space<vmem>>, vector<4x64xf32>,
    %45 = vector.extract_strided_slice %3 {offsets = [1, 0, 0], sizes = [1, 4, 64], strides = [1, 1, 1]} : vector<4x4x64xf32> to vector<1x4x64xf32>
    %46 = vector.shape_cast %45 : vector<1x4x64xf32> to vector<4x64xf32>
    %c6 = arith.constant 6 : index
    %c0_19 = arith.constant 0 : index
    %47 = vector.load %arg4[%c6, %c0_19] : memref<16x64xf32, #tpu.memory_space<vmem>>, vector<1x64xf32>
    %48 = vector.broadcast %47 : vector<1x64xf32> to vector<4x64xf32>
    %49 = arith.mulf %46, %48 : vector<4x64xf32>
    %c24 = arith.constant 24 : index
    %c0_20 = arith.constant 0 : index
    %50 = vector.load %arg9[%c24, %c0_20] : memref<64x64xf32, #tpu.memory_space<vmem>>, vector<4x64xf32>
    tpu.vector_store %arg9[%c24, %c0_20], %49 {strides = array<i32>} : memref<64x64xf32, #tpu.memory_space<vmem>>, vector<4x64xf32>,
    %51 = vector.extract_strided_slice %3 {offsets = [0, 0, 0], sizes = [1, 4, 64], strides = [1, 1, 1]} : vector<4x4x64xf32> to vector<1x4x64xf32>
    %52 = vector.shape_cast %51 : vector<1x4x64xf32> to vector<4x64xf32>
    %c63_i32 = arith.constant 63 : i32
    %53 = tpu.dynamic_rotate %52 by %c63_i32 dim 1 : vector<4x64xf32>, i32 -> vector<4x64xf32>
    %c7 = arith.constant 7 : index
    %c0_21 = arith.constant 0 : index
    %54 = vector.load %arg4[%c7, %c0_21] : memref<16x64xf32, #tpu.memory_space<vmem>>, vector<1x64xf32>
    %55 = vector.broadcast %54 : vector<1x64xf32> to vector<4x64xf32>
    %56 = arith.mulf %53, %55 : vector<4x64xf32>
    %c28 = arith.constant 28 : index
    %c0_22 = arith.constant 0 : index
    %57 = vector.load %arg9[%c28, %c0_22] : memref<64x64xf32, #tpu.memory_space<vmem>>, vector<4x64xf32>
    tpu.vector_store %arg9[%c28, %c0_22], %56 {strides = array<i32>} : memref<64x64xf32, #tpu.memory_space<vmem>>, vector<4x64xf32>,
    %58 = vector.extract_strided_slice %3 {offsets = [3, 0, 0], sizes = [1, 4, 64], strides = [1, 1, 1]} : vector<4x4x64xf32> to vector<1x4x64xf32>
    %59 = vector.shape_cast %58 : vector<1x4x64xf32> to vector<4x64xf32>
    %c1_i32_23 = arith.constant 1 : i32
    %60 = tpu.dynamic_rotate %59 by %c1_i32_23 dim 1 : vector<4x64xf32>, i32 -> vector<4x64xf32>
    %c8_24 = arith.constant 8 : index
    %c0_25 = arith.constant 0 : index
    %61 = vector.load %arg4[%c8_24, %c0_25] : memref<16x64xf32, #tpu.memory_space<vmem>>, vector<1x64xf32>
    %62 = vector.broadcast %61 : vector<1x64xf32> to vector<4x64xf32>
    %63 = arith.mulf %60, %62 : vector<4x64xf32>
    %c32 = arith.constant 32 : index
    %c0_26 = arith.constant 0 : index
    %64 = vector.load %arg9[%c32, %c0_26] : memref<64x64xf32, #tpu.memory_space<vmem>>, vector<4x64xf32>
    tpu.vector_store %arg9[%c32, %c0_26], %63 {strides = array<i32>} : memref<64x64xf32, #tpu.memory_space<vmem>>, vector<4x64xf32>,
    %65 = vector.extract_strided_slice %3 {offsets = [2, 0, 0], sizes = [1, 4, 64], strides = [1, 1, 1]} : vector<4x4x64xf32> to vector<1x4x64xf32>
    %66 = vector.shape_cast %65 : vector<1x4x64xf32> to vector<4x64xf32>
    %c9 = arith.constant 9 : index
    %c0_27 = arith.constant 0 : index
    %67 = vector.load %arg4[%c9, %c0_27] : memref<16x64xf32, #tpu.memory_space<vmem>>, vector<1x64xf32>
    %68 = vector.broadcast %67 : vector<1x64xf32> to vector<4x64xf32>
    %69 = arith.mulf %66, %68 : vector<4x64xf32>
    %c36 = arith.constant 36 : index
    %c0_28 = arith.constant 0 : index
    %70 = vector.load %arg9[%c36, %c0_28] : memref<64x64xf32, #tpu.memory_space<vmem>>, vector<4x64xf32>
    tpu.vector_store %arg9[%c36, %c0_28], %69 {strides = array<i32>} : memref<64x64xf32, #tpu.memory_space<vmem>>, vector<4x64xf32>,
    %71 = vector.extract_strided_slice %3 {offsets = [3, 0, 0], sizes = [1, 4, 64], strides = [1, 1, 1]} : vector<4x4x64xf32> to vector<1x4x64xf32>
    %72 = vector.shape_cast %71 : vector<1x4x64xf32> to vector<4x64xf32>
    %c10 = arith.constant 10 : index
    %c0_29 = arith.constant 0 : index
    %73 = vector.load %arg4[%c10, %c0_29] : memref<16x64xf32, #tpu.memory_space<vmem>>, vector<1x64xf32>
    %74 = vector.broadcast %73 : vector<1x64xf32> to vector<4x64xf32>
    %75 = arith.mulf %72, %74 : vector<4x64xf32>
    %c40 = arith.constant 40 : index
    %c0_30 = arith.constant 0 : index
    %76 = vector.load %arg9[%c40, %c0_30] : memref<64x64xf32, #tpu.memory_space<vmem>>, vector<4x64xf32>
    tpu.vector_store %arg9[%c40, %c0_30], %75 {strides = array<i32>} : memref<64x64xf32, #tpu.memory_space<vmem>>, vector<4x64xf32>,
    %77 = vector.extract_strided_slice %3 {offsets = [2, 0, 0], sizes = [1, 4, 64], strides = [1, 1, 1]} : vector<4x4x64xf32> to vector<1x4x64xf32>
    %78 = vector.shape_cast %77 : vector<1x4x64xf32> to vector<4x64xf32>
    %c63_i32_31 = arith.constant 63 : i32
    %79 = tpu.dynamic_rotate %78 by %c63_i32_31 dim 1 : vector<4x64xf32>, i32 -> vector<4x64xf32>
    %c11 = arith.constant 11 : index
    %c0_32 = arith.constant 0 : index
    %80 = vector.load %arg4[%c11, %c0_32] : memref<16x64xf32, #tpu.memory_space<vmem>>, vector<1x64xf32>
    %81 = vector.broadcast %80 : vector<1x64xf32> to vector<4x64xf32>
    %82 = arith.mulf %79, %81 : vector<4x64xf32>
    %c44 = arith.constant 44 : index
    %c0_33 = arith.constant 0 : index
    %83 = vector.load %arg9[%c44, %c0_33] : memref<64x64xf32, #tpu.memory_space<vmem>>, vector<4x64xf32>
    tpu.vector_store %arg9[%c44, %c0_33], %82 {strides = array<i32>} : memref<64x64xf32, #tpu.memory_space<vmem>>, vector<4x64xf32>,
    %84 = vector.extract_strided_slice %3 {offsets = [1, 0, 0], sizes = [1, 4, 64], strides = [1, 1, 1]} : vector<4x4x64xf32> to vector<1x4x64xf32>
    %85 = vector.shape_cast %84 : vector<1x4x64xf32> to vector<4x64xf32>
    %c57_i32 = arith.constant 57 : i32
    %86 = tpu.dynamic_rotate %85 by %c57_i32 dim 1 : vector<4x64xf32>, i32 -> vector<4x64xf32>
    %c12_34 = arith.constant 12 : index
    %c0_35 = arith.constant 0 : index
    %87 = vector.load %arg4[%c12_34, %c0_35] : memref<16x64xf32, #tpu.memory_space<vmem>>, vector<1x64xf32>
    %88 = vector.broadcast %87 : vector<1x64xf32> to vector<4x64xf32>
    %89 = arith.mulf %86, %88 : vector<4x64xf32>
    %c48 = arith.constant 48 : index
    %c0_36 = arith.constant 0 : index
    %90 = vector.load %arg9[%c48, %c0_36] : memref<64x64xf32, #tpu.memory_space<vmem>>, vector<4x64xf32>
    tpu.vector_store %arg9[%c48, %c0_36], %89 {strides = array<i32>} : memref<64x64xf32, #tpu.memory_space<vmem>>, vector<4x64xf32>,
    %91 = vector.extract_strided_slice %3 {offsets = [0, 0, 0], sizes = [1, 4, 64], strides = [1, 1, 1]} : vector<4x4x64xf32> to vector<1x4x64xf32>
    %92 = vector.shape_cast %91 : vector<1x4x64xf32> to vector<4x64xf32>
    %c56_i32 = arith.constant 56 : i32
    %93 = tpu.dynamic_rotate %92 by %c56_i32 dim 1 : vector<4x64xf32>, i32 -> vector<4x64xf32>
    %c13 = arith.constant 13 : index
    %c0_37 = arith.constant 0 : index
    %94 = vector.load %arg4[%c13, %c0_37] : memref<16x64xf32, #tpu.memory_space<vmem>>, vector<1x64xf32>
    %95 = vector.broadcast %94 : vector<1x64xf32> to vector<4x64xf32>
    %96 = arith.mulf %93, %95 : vector<4x64xf32>
    %c52 = arith.constant 52 : index
    %c0_38 = arith.constant 0 : index
    %97 = vector.load %arg9[%c52, %c0_38] : memref<64x64xf32, #tpu.memory_space<vmem>>, vector<4x64xf32>
    tpu.vector_store %arg9[%c52, %c0_38], %96 {strides = array<i32>} : memref<64x64xf32, #tpu.memory_space<vmem>>, vector<4x64xf32>,
    %98 = vector.extract_strided_slice %3 {offsets = [1, 0, 0], sizes = [1, 4, 64], strides = [1, 1, 1]} : vector<4x4x64xf32> to vector<1x4x64xf32>
    %99 = vector.shape_cast %98 : vector<1x4x64xf32> to vector<4x64xf32>
    %c56_i32_39 = arith.constant 56 : i32
    %100 = tpu.dynamic_rotate %99 by %c56_i32_39 dim 1 : vector<4x64xf32>, i32 -> vector<4x64xf32>
    %c14 = arith.constant 14 : index
    %c0_40 = arith.constant 0 : index
    %101 = vector.load %arg4[%c14, %c0_40] : memref<16x64xf32, #tpu.memory_space<vmem>>, vector<1x64xf32>
    %102 = vector.broadcast %101 : vector<1x64xf32> to vector<4x64xf32>
    %103 = arith.mulf %100, %102 : vector<4x64xf32>
    %c56 = arith.constant 56 : index
    %c0_41 = arith.constant 0 : index
    %104 = vector.load %arg9[%c56, %c0_41] : memref<64x64xf32, #tpu.memory_space<vmem>>, vector<4x64xf32>
    tpu.vector_store %arg9[%c56, %c0_41], %103 {strides = array<i32>} : memref<64x64xf32, #tpu.memory_space<vmem>>, vector<4x64xf32>,
    %105 = vector.extract_strided_slice %3 {offsets = [0, 0, 0], sizes = [1, 4, 64], strides = [1, 1, 1]} : vector<4x4x64xf32> to vector<1x4x64xf32>
    %106 = vector.shape_cast %105 : vector<1x4x64xf32> to vector<4x64xf32>
    %c55_i32 = arith.constant 55 : i32
    %107 = tpu.dynamic_rotate %106 by %c55_i32 dim 1 : vector<4x64xf32>, i32 -> vector<4x64xf32>
    %c15 = arith.constant 15 : index
    %c0_42 = arith.constant 0 : index
    %108 = vector.load %arg4[%c15, %c0_42] : memref<16x64xf32, #tpu.memory_space<vmem>>, vector<1x64xf32>
    %109 = vector.broadcast %108 : vector<1x64xf32> to vector<4x64xf32>
    %110 = arith.mulf %107, %109 : vector<4x64xf32>
    %c60 = arith.constant 60 : index
    %c0_43 = arith.constant 0 : index
    %111 = vector.load %arg9[%c60, %c0_43] : memref<64x64xf32, #tpu.memory_space<vmem>>, vector<4x64xf32>
    tpu.vector_store %arg9[%c60, %c0_43], %110 {strides = array<i32>} : memref<64x64xf32, #tpu.memory_space<vmem>>, vector<4x64xf32>,
    %c0_44 = arith.constant 0 : index
    %c0_45 = arith.constant 0 : index
    %112 = vector.load %arg2[%c0_44, %c0_45] : memref<8x64xf32, #tpu.memory_space<vmem>>, vector<8x64xf32>
    %c0_46 = arith.constant 0 : index
    %c0_47 = arith.constant 0 : index
    %113 = vector.load %arg9[%c0_46, %c0_47] : memref<64x64xf32, #tpu.memory_space<vmem>>, vector<64x64xf32>
    %cst_48 = arith.constant dense<0.000000e+00> : vector<8x64xf32>
    %114 = tpu.matmul %112, %113, %cst_48 {dimension_numbers = #tpu.dot_dimension_numbers<[1], [0], [0], [1], [0, 0, 1, 1], [], []>} : vector<8x64xf32>, vector<64x64xf32>, vector<8x64xf32> -> vector<8x64xf32>
    %c0_49 = arith.constant 0 : index
    %c0_50 = arith.constant 0 : index
    %115 = vector.load %arg3[%c0_49, %c0_50] : memref<8x1xf32, #tpu.memory_space<vmem>>, vector<8x1xf32>
    %116 = vector.broadcast %115 : vector<8x1xf32> to vector<8x64xf32>
    %117 = arith.addf %114, %116 : vector<8x64xf32>
    %cst_51 = arith.constant dense<0.000000e+00> : vector<8xf32>
    %118 = vector.multi_reduction <add>, %117, %cst_51 [1] : vector<8x64xf32> to vector<8xf32>
    %119 = vector.shape_cast %118 : vector<8xf32> to vector<8x1xf32>
    %cst_52 = arith.constant 6.400000e+01 : f32
    %120 = vector.broadcast %cst_52 : f32 to vector<8x1xf32>
    %121 = arith.divf %119, %120 : vector<8x1xf32>
    %122 = vector.broadcast %121 : vector<8x1xf32> to vector<8x64xf32>
    %123 = arith.subf %117, %122 : vector<8x64xf32>
    %124 = arith.mulf %123, %123 : vector<8x64xf32>
    %cst_53 = arith.constant dense<0.000000e+00> : vector<8xf32>
    %125 = vector.multi_reduction <add>, %124, %cst_53 [1] : vector<8x64xf32> to vector<8xf32>
    %126 = vector.shape_cast %125 : vector<8xf32> to vector<8x1xf32>
    %cst_54 = arith.constant 6.400000e+01 : f32
    %127 = vector.broadcast %cst_54 : f32 to vector<8x1xf32>
    %128 = arith.divf %126, %127 : vector<8x1xf32>
    %129 = vector.broadcast %121 : vector<8x1xf32> to vector<8x64xf32>
    %130 = arith.subf %117, %129 : vector<8x64xf32>
    %cst_55 = arith.constant 9.99999974E-6 : f32
    %131 = vector.broadcast %cst_55 : f32 to vector<8x1xf32>
    %132 = arith.addf %128, %131 : vector<8x1xf32>
    %133 = math.rsqrt %132 : vector<8x1xf32>
    %134 = vector.broadcast %133 : vector<8x1xf32> to vector<8x64xf32>
    %135 = arith.mulf %130, %134 : vector<8x64xf32>
    %cst_56 = arith.constant 0.000000e+00 : f32
    %136 = vector.broadcast %cst_56 : f32 to vector<8x64xf32>
    %137 = arith.maximumf %135, %136 : vector<8x64xf32>
    %c9_i32_57 = arith.constant 9 : i32
    %138 = tpu.dynamic_rotate %137 by %c9_i32_57 dim 1 : vector<8x64xf32>, i32 -> vector<8x64xf32>
    %c0_58 = arith.constant 0 : index
    %c0_59 = arith.constant 0 : index
    %139 = vector.load %arg7[%c0_58, %c0_59] : memref<9x64xf32, #tpu.memory_space<vmem>>, vector<1x64xf32>
    %140 = vector.broadcast %139 : vector<1x64xf32> to vector<8x64xf32>
    %141 = arith.mulf %138, %140 : vector<8x64xf32>
    %c0_60 = arith.constant 0 : index
    %c0_61 = arith.constant 0 : index
    %142 = vector.load %arg10[%c0_60, %c0_61] : memref<72x64xf32, #tpu.memory_space<vmem>>, vector<8x64xf32>
    tpu.vector_store %arg10[%c0_60, %c0_61], %141 {strides = array<i32>} : memref<72x64xf32, #tpu.memory_space<vmem>>, vector<8x64xf32>,
    %c8_i32_62 = arith.constant 8 : i32
    %143 = tpu.dynamic_rotate %137 by %c8_i32_62 dim 1 : vector<8x64xf32>, i32 -> vector<8x64xf32>
    %c1_63 = arith.constant 1 : index
    %c0_64 = arith.constant 0 : index
    %144 = vector.load %arg7[%c1_63, %c0_64] : memref<9x64xf32, #tpu.memory_space<vmem>>, vector<1x64xf32>
    %145 = vector.broadcast %144 : vector<1x64xf32> to vector<8x64xf32>
    %146 = arith.mulf %143, %145 : vector<8x64xf32>
    %c8_65 = arith.constant 8 : index
    %c0_66 = arith.constant 0 : index
    %147 = vector.load %arg10[%c8_65, %c0_66] : memref<72x64xf32, #tpu.memory_space<vmem>>, vector<8x64xf32>
    tpu.vector_store %arg10[%c8_65, %c0_66], %146 {strides = array<i32>} : memref<72x64xf32, #tpu.memory_space<vmem>>, vector<8x64xf32>,
    %c7_i32_67 = arith.constant 7 : i32
    %148 = tpu.dynamic_rotate %137 by %c7_i32_67 dim 1 : vector<8x64xf32>, i32 -> vector<8x64xf32>
    %c2_68 = arith.constant 2 : index
    %c0_69 = arith.constant 0 : index
    %149 = vector.load %arg7[%c2_68, %c0_69] : memref<9x64xf32, #tpu.memory_space<vmem>>, vector<1x64xf32>
    %150 = vector.broadcast %149 : vector<1x64xf32> to vector<8x64xf32>
    %151 = arith.mulf %148, %150 : vector<8x64xf32>
    %c16_70 = arith.constant 16 : index
    %c0_71 = arith.constant 0 : index
    %152 = vector.load %arg10[%c16_70, %c0_71] : memref<72x64xf32, #tpu.memory_space<vmem>>, vector<8x64xf32>
    tpu.vector_store %arg10[%c16_70, %c0_71], %151 {strides = array<i32>} : memref<72x64xf32, #tpu.memory_space<vmem>>, vector<8x64xf32>,
    %c1_i32_72 = arith.constant 1 : i32
    %153 = tpu.dynamic_rotate %137 by %c1_i32_72 dim 1 : vector<8x64xf32>, i32 -> vector<8x64xf32>
    %c3_73 = arith.constant 3 : index
    %c0_74 = arith.constant 0 : index
    %154 = vector.load %arg7[%c3_73, %c0_74] : memref<9x64xf32, #tpu.memory_space<vmem>>, vector<1x64xf32>
    %155 = vector.broadcast %154 : vector<1x64xf32> to vector<8x64xf32>
    %156 = arith.mulf %153, %155 : vector<8x64xf32>
    %c24_75 = arith.constant 24 : index
    %c0_76 = arith.constant 0 : index
    %157 = vector.load %arg10[%c24_75, %c0_76] : memref<72x64xf32, #tpu.memory_space<vmem>>, vector<8x64xf32>
    tpu.vector_store %arg10[%c24_75, %c0_76], %156 {strides = array<i32>} : memref<72x64xf32, #tpu.memory_space<vmem>>, vector<8x64xf32>,
    %c4_77 = arith.constant 4 : index
    %c0_78 = arith.constant 0 : index
    %158 = vector.load %arg7[%c4_77, %c0_78] : memref<9x64xf32, #tpu.memory_space<vmem>>, vector<1x64xf32>
    %159 = vector.broadcast %158 : vector<1x64xf32> to vector<8x64xf32>
    %160 = arith.mulf %137, %159 : vector<8x64xf32>
    %c32_79 = arith.constant 32 : index
    %c0_80 = arith.constant 0 : index
    %161 = vector.load %arg10[%c32_79, %c0_80] : memref<72x64xf32, #tpu.memory_space<vmem>>, vector<8x64xf32>
    tpu.vector_store %arg10[%c32_79, %c0_80], %160 {strides = array<i32>} : memref<72x64xf32, #tpu.memory_space<vmem>>, vector<8x64xf32>,
    %c63_i32_81 = arith.constant 63 : i32
    %162 = tpu.dynamic_rotate %137 by %c63_i32_81 dim 1 : vector<8x64xf32>, i32 -> vector<8x64xf32>
    %c5_82 = arith.constant 5 : index
    %c0_83 = arith.constant 0 : index
    %163 = vector.load %arg7[%c5_82, %c0_83] : memref<9x64xf32, #tpu.memory_space<vmem>>, vector<1x64xf32>
    %164 = vector.broadcast %163 : vector<1x64xf32> to vector<8x64xf32>
    %165 = arith.mulf %162, %164 : vector<8x64xf32>
    %c40_84 = arith.constant 40 : index
    %c0_85 = arith.constant 0 : index
    %166 = vector.load %arg10[%c40_84, %c0_85] : memref<72x64xf32, #tpu.memory_space<vmem>>, vector<8x64xf32>
    tpu.vector_store %arg10[%c40_84, %c0_85], %165 {strides = array<i32>} : memref<72x64xf32, #tpu.memory_space<vmem>>, vector<8x64xf32>,
    %c57_i32_86 = arith.constant 57 : i32
    %167 = tpu.dynamic_rotate %137 by %c57_i32_86 dim 1 : vector<8x64xf32>, i32 -> vector<8x64xf32>
    %c6_87 = arith.constant 6 : index
    %c0_88 = arith.constant 0 : index
    %168 = vector.load %arg7[%c6_87, %c0_88] : memref<9x64xf32, #tpu.memory_space<vmem>>, vector<1x64xf32>
    %169 = vector.broadcast %168 : vector<1x64xf32> to vector<8x64xf32>
    %170 = arith.mulf %167, %169 : vector<8x64xf32>
    %c48_89 = arith.constant 48 : index
    %c0_90 = arith.constant 0 : index
    %171 = vector.load %arg10[%c48_89, %c0_90] : memref<72x64xf32, #tpu.memory_space<vmem>>, vector<8x64xf32>
    tpu.vector_store %arg10[%c48_89, %c0_90], %170 {strides = array<i32>} : memref<72x64xf32, #tpu.memory_space<vmem>>, vector<8x64xf32>,
    %c56_i32_91 = arith.constant 56 : i32
    %172 = tpu.dynamic_rotate %137 by %c56_i32_91 dim 1 : vector<8x64xf32>, i32 -> vector<8x64xf32>
    %c7_92 = arith.constant 7 : index
    %c0_93 = arith.constant 0 : index
    %173 = vector.load %arg7[%c7_92, %c0_93] : memref<9x64xf32, #tpu.memory_space<vmem>>, vector<1x64xf32>
    %174 = vector.broadcast %173 : vector<1x64xf32> to vector<8x64xf32>
    %175 = arith.mulf %172, %174 : vector<8x64xf32>
    %c56_94 = arith.constant 56 : index
    %c0_95 = arith.constant 0 : index
    %176 = vector.load %arg10[%c56_94, %c0_95] : memref<72x64xf32, #tpu.memory_space<vmem>>, vector<8x64xf32>
    tpu.vector_store %arg10[%c56_94, %c0_95], %175 {strides = array<i32>} : memref<72x64xf32, #tpu.memory_space<vmem>>, vector<8x64xf32>,
    %c55_i32_96 = arith.constant 55 : i32
    %177 = tpu.dynamic_rotate %137 by %c55_i32_96 dim 1 : vector<8x64xf32>, i32 -> vector<8x64xf32>
    %c8_97 = arith.constant 8 : index
    %c0_98 = arith.constant 0 : index
    %178 = vector.load %arg7[%c8_97, %c0_98] : memref<9x64xf32, #tpu.memory_space<vmem>>, vector<1x64xf32>
    %179 = vector.broadcast %178 : vector<1x64xf32> to vector<8x64xf32>
    %180 = arith.mulf %177, %179 : vector<8x64xf32>
    %c64 = arith.constant 64 : index
    %c0_99 = arith.constant 0 : index
    %181 = vector.load %arg10[%c64, %c0_99] : memref<72x64xf32, #tpu.memory_space<vmem>>, vector<8x64xf32>
    tpu.vector_store %arg10[%c64, %c0_99], %180 {strides = array<i32>} : memref<72x64xf32, #tpu.memory_space<vmem>>, vector<8x64xf32>,
    %c0_100 = arith.constant 0 : index
    %c0_101 = arith.constant 0 : index
    %182 = vector.load %arg5[%c0_100, %c0_101] : memref<8x72xf32, #tpu.memory_space<vmem>>, vector<8x72xf32>
    %c0_102 = arith.constant 0 : index
    %c0_103 = arith.constant 0 : index
    %183 = vector.load %arg10[%c0_102, %c0_103] : memref<72x64xf32, #tpu.memory_space<vmem>>, vector<72x64xf32>
    %cst_104 = arith.constant dense<0.000000e+00> : vector<8x64xf32>
    %184 = tpu.matmul %182, %183, %cst_104 {dimension_numbers = #tpu.dot_dimension_numbers<[1], [0], [0], [1], [0, 0, 1, 1], [], []>} : vector<8x72xf32>, vector<72x64xf32>, vector<8x64xf32> -> vector<8x64xf32>
    %c0_105 = arith.constant 0 : index
    %c0_106 = arith.constant 0 : index
    %185 = vector.load %arg6[%c0_105, %c0_106] : memref<8x1xf32, #tpu.memory_space<vmem>>, vector<8x1xf32>
    %186 = vector.broadcast %185 : vector<8x1xf32> to vector<8x64xf32>
    %187 = arith.addf %184, %186 : vector<8x64xf32>
    %cst_107 = arith.constant dense<0.000000e+00> : vector<8xf32>
    %188 = vector.multi_reduction <add>, %187, %cst_107 [1] : vector<8x64xf32> to vector<8xf32>
    %189 = vector.shape_cast %188 : vector<8xf32> to vector<8x1xf32>
    %cst_108 = arith.constant 6.400000e+01 : f32
    %190 = vector.broadcast %cst_108 : f32 to vector<8x1xf32>
    %191 = arith.divf %189, %190 : vector<8x1xf32>
    %192 = vector.broadcast %191 : vector<8x1xf32> to vector<8x64xf32>
    %193 = arith.subf %187, %192 : vector<8x64xf32>
    %194 = arith.mulf %193, %193 : vector<8x64xf32>
    %cst_109 = arith.constant dense<0.000000e+00> : vector<8xf32>
    %195 = vector.multi_reduction <add>, %194, %cst_109 [1] : vector<8x64xf32> to vector<8xf32>
    %196 = vector.shape_cast %195 : vector<8xf32> to vector<8x1xf32>
    %cst_110 = arith.constant 6.400000e+01 : f32
    %197 = vector.broadcast %cst_110 : f32 to vector<8x1xf32>
    %198 = arith.divf %196, %197 : vector<8x1xf32>
    %199 = vector.broadcast %191 : vector<8x1xf32> to vector<8x64xf32>
    %200 = arith.subf %187, %199 : vector<8x64xf32>
    %cst_111 = arith.constant 9.99999974E-6 : f32
    %201 = vector.broadcast %cst_111 : f32 to vector<8x1xf32>
    %202 = arith.addf %198, %201 : vector<8x1xf32>
    %203 = math.rsqrt %202 : vector<8x1xf32>
    %204 = vector.broadcast %203 : vector<8x1xf32> to vector<8x64xf32>
    %205 = arith.mulf %200, %204 : vector<8x64xf32>
    %c0_112 = arith.constant 0 : index
    %c0_113 = arith.constant 0 : index
    %c0_114 = arith.constant 0 : index
    %206 = vector.load %arg8[%c0_112, %c0_113, %c0_114] : memref<1x8x64xf32, #tpu.memory_space<vmem>>, vector<1x8x64xf32>
    %207 = vector.shape_cast %206 : vector<1x8x64xf32> to vector<8x64xf32>
    %208 = vector.shape_cast %205 : vector<8x64xf32> to vector<1x8x64xf32>
    tpu.vector_store %arg8[%c0_112, %c0_113, %c0_114], %208 {strides = array<i32>} : memref<1x8x64xf32, #tpu.memory_space<vmem>>, vector<1x8x64xf32>,
    return
  }
  func.func @transform_0(%arg0: i32) -> (i32, i32, i32, i32) {
    %c0_i32 = arith.constant 0 : i32
    %c0_i32_0 = arith.constant 0 : i32
    %c0_i32_1 = arith.constant 0 : i32
    %c0_i32_2 = arith.constant 0 : i32
    return %arg0, %c0_i32, %c0_i32_0, %c0_i32_1 : i32, i32, i32, i32
  }
  func.func @transform_1(%arg0: i32) -> (i32, i32) {
    %c0_i32 = arith.constant 0 : i32
    %c0_i32_0 = arith.constant 0 : i32
    %c0_i32_1 = arith.constant 0 : i32
    return %c0_i32, %c0_i32_0 : i32, i32
  }
  func.func @transform_2(%arg0: i32) -> (i32, i32) {
    %c0_i32 = arith.constant 0 : i32
    %c0_i32_0 = arith.constant 0 : i32
    %c0_i32_1 = arith.constant 0 : i32
    return %c0_i32, %c0_i32_0 : i32, i32
  }
  func.func @transform_3(%arg0: i32) -> (i32, i32) {
    %c0_i32 = arith.constant 0 : i32
    %c0_i32_0 = arith.constant 0 : i32
    %c0_i32_1 = arith.constant 0 : i32
    return %c0_i32, %c0_i32_0 : i32, i32
  }
  func.func @transform_4(%arg0: i32) -> (i32, i32) {
    %c0_i32 = arith.constant 0 : i32
    %c0_i32_0 = arith.constant 0 : i32
    %c0_i32_1 = arith.constant 0 : i32
    return %c0_i32, %c0_i32_0 : i32, i32
  }
  func.func @transform_5(%arg0: i32) -> (i32, i32) {
    %c0_i32 = arith.constant 0 : i32
    %c0_i32_0 = arith.constant 0 : i32
    %c0_i32_1 = arith.constant 0 : i32
    return %c0_i32, %c0_i32_0 : i32, i32
  }
  func.func @transform_6(%arg0: i32) -> (i32, i32) {
    %c0_i32 = arith.constant 0 : i32
    %c0_i32_0 = arith.constant 0 : i32
    %c0_i32_1 = arith.constant 0 : i32
    return %c0_i32, %c0_i32_0 : i32, i32
  }
  func.func @transform_7(%arg0: i32) -> (i32, i32, i32) {
    %c0_i32 = arith.constant 0 : i32
    %c0_i32_0 = arith.constant 0 : i32
    %c0_i32_1 = arith.constant 0 : i32
    return %arg0, %c0_i32, %c0_i32_0 : i32, i32, i32
  }
}

</mosaic_0001>

<llo_original>
// kernel: unet_encoder_block.1
$region0: #{unet_encoder_block.1}
  #allocation0 [shape = 'u32[]', space=smem, size = 0x4, offset = 0x4, fixed_abs, tag = 'smem constant byte address 0x4 - core index']
  #allocation1 [shape = 'u32[144,128]{1,0:T(1,128)}', space=vmem, size = 0x12000, scoped, tag = 'internal scratch']
  #allocation2 [shape = 'f32[64,64]{1,0:T(8,128)}', space=vmem, size = 0x8000, scoped, tag = 'scratch operand']
  #allocation3 [shape = 'f32[72,64]{1,0:T(8,128)}', space=vmem, size = 0x9000, scoped, tag = 'scratch operand']
  %s0 = inlined_call_operand.vmem [shape: f32[2,4,4,64], index: 0, kind: input, shape index: {}]
  %s1 = inlined_call_operand.vmem [shape: f32[8,64], index: 1, kind: input, shape index: {}]
  %s2 = inlined_call_operand.vmem [shape: f32[8,1], index: 2, kind: input, shape index: {}]
  %s3 = inlined_call_operand.vmem [shape: f32[16,64], index: 3, kind: input, shape index: {}]
  %s4 = inlined_call_operand.vmem [shape: f32[8,72], index: 4, kind: input, shape index: {}]
  %s5 = inlined_call_operand.vmem [shape: f32[8,1], index: 5, kind: input, shape index: {}]
  %s6 = inlined_call_operand.vmem [shape: f32[9,64], index: 6, kind: input, shape index: {}]
  %s7 = inlined_call_operand.vmem [shape: f32[2,8,64], index: 7, kind: output, shape index: {}]
  %s8 = sld [smem:[#allocation0]]
  $region61: #{unet_encoder_block.1} parent=0
    _
  %s10 = ssub.s32 1, %s8
  %s11 = scalar_select 0, %s10, %s8
  loop: start=0, step=1, limit=4
  $region2: #{unet_encoder_block.1} parent=0 // loop_pre_header
    _
  $region3: #{unet_encoder_block.1} parent=0 // loop_header
    %s13 = sphi 0, %s17
    %p14 = scmp.ge.s32.totalorder %s13, 4
    %s23 = sphi 0, %s25
    %s26 = sphi 0, %s23
    %s27 = sphi 0, %s26
    %s43 = sphi 0, %s27
    %s47 = sphi 0, %s47
    %s49 = sphi 0, %s47
    %s50 = sphi 0, %s49
    %s64 = sphi 0, %s50
    %s68 = sphi 0, %s68
    %s70 = sphi 0, %s68
    %s71 = sphi 0, %s70
    %s85 = sphi 0, %s71
    %s89 = sphi 0, %s89
    %s91 = sphi 0, %s89
    %s92 = sphi 0, %s91
    %s106 = sphi 0, %s92
    %s110 = sphi 0, %s110
    %s112 = sphi 0, %s110
    %s113 = sphi 0, %s112
    %s127 = sphi 0, %s113
    %s131 = sphi 0, %s131
    %s133 = sphi 0, %s131
    %s134 = sphi 0, %s133
    %s148 = sphi 0, %s134
    %s152 = sphi 0, %s152
    %s154 = sphi 0, %s152
    %s155 = sphi 0, %s154
    %s169 = sphi 0, %s155
    %s175 = sphi 0, %s177
    %s178 = sphi 0, %s175
    %s179 = sphi 0, %s178
    %s195 = sphi 0, %s179
  $region4: #{unet_encoder_block.1} parent=0 // loop_header_branch
    %16 = sbr.rel (%p14) target = $region8
  $region5: #{unet_encoder_block.1} parent=0 // loop_body
    %s18 = ssub.s32 %s13, 1
    %s19 = ssub.s32 %s13, 2
    %s20 = sadd.s32 %s13, 1
    %s21 = ssub.s32 %s13, %s20
    %p22 = scmp.eq.s32.totalorder %s21, 0
    %s24 = sadd.s32 %s23, 1
    %s25 = scalar_select %p22, %s23, %s24
    %p28 = pneg %p22
    %p29 = scmp.eq.s32.totalorder %s13, 1
    %p30 = por %p28, %p29
    %p31 = scmp.ne.s32.totalorder %s23, %s26
    %p32 = scmp.eq.s32.totalorder %s13, 0
    %p33 = por %p31, %p32
    %p34 = scmp.ne.s32.totalorder %s23, %s26
    %p35 = scmp.eq.s32.totalorder %s18, 1
    %p36 = por %p34, %p35
    %p37 = scmp.ne.s32.totalorder %s26, %s27
    %p38 = scmp.eq.s32.totalorder %s18, 0
    %p39 = por %p37, %p38
    %p40 = scmp.ne.s32.totalorder %s26, %s27
    %p41 = scmp.eq.s32.totalorder %s19, 1
    %p42 = por %p40, %p41
    %p44 = scmp.ne.s32.totalorder %s27, %s43
    %p45 = scmp.eq.s32.totalorder %s19, 0
    %p46 = por %p44, %p45
    %s48 = sadd.s32 %s47, 1
    %p51 = scmp.eq.s32.totalorder %s13, 1
    %p52 = scmp.ne.s32.totalorder %s47, %s49
    %p53 = scmp.eq.s32.totalorder %s13, 0
    %p54 = por %p52, %p53
    %p55 = scmp.ne.s32.totalorder %s47, %s49
    %p56 = scmp.eq.s32.totalorder %s18, 1
    %p57 = por %p55, %p56
    %p58 = scmp.ne.s32.totalorder %s49, %s50
    %p59 = scmp.eq.s32.totalorder %s18, 0
    %p60 = por %p58, %p59
    %p61 = scmp.ne.s32.totalorder %s49, %s50
    %p62 = scmp.eq.s32.totalorder %s19, 1
    %p63 = por %p61, %p62
    %p65 = scmp.ne.s32.totalorder %s50, %s64
    %p66 = scmp.eq.s32.totalorder %s19, 0
    %p67 = por %p65, %p66
    %s69 = sadd.s32 %s68, 1
    %p72 = scmp.eq.s32.totalorder %s13, 1
    %p73 = scmp.ne.s32.totalorder %s68, %s70
    %p74 = scmp.eq.s32.totalorder %s13, 0
    %p75 = por %p73, %p74
    %p76 = scmp.ne.s32.totalorder %s68, %s70
    %p77 = scmp.eq.s32.totalorder %s18, 1
    %p78 = por %p76, %p77
    %p79 = scmp.ne.s32.totalorder %s70, %s71
    %p80 = scmp.eq.s32.totalorder %s18, 0
    %p81 = por %p79, %p80
    %p82 = scmp.ne.s32.totalorder %s70, %s71
    %p83 = scmp.eq.s32.totalorder %s19, 1
    %p84 = por %p82, %p83
    %p86 = scmp.ne.s32.totalorder %s71, %s85
    %p87 = scmp.eq.s32.totalorder %s19, 0
    %p88 = por %p86, %p87
    %s90 = sadd.s32 %s89, 1
    %p93 = scmp.eq.s32.totalorder %s13, 1
    %p94 = scmp.ne.s32.totalorder %s89, %s91
    %p95 = scmp.eq.s32.totalorder %s13, 0
    %p96 = por %p94, %p95
    %p97 = scmp.ne.s32.totalorder %s89, %s91
    %p98 = scmp.eq.s32.totalorder %s18, 1
    %p99 = por %p97, %p98
    %p100 = scmp.ne.s32.totalorder %s91, %s92
    %p101 = scmp.eq.s32.totalorder %s18, 0
    %p102 = por %p100, %p101
    %p103 = scmp.ne.s32.totalorder %s91, %s92
    %p104 = scmp.eq.s32.totalorder %s19, 1
    %p105 = por %p103, %p104
    %p107 = scmp.ne.s32.totalorder %s92, %s106
    %p108 = scmp.eq.s32.totalorder %s19, 0
    %p109 = por %p107, %p108
    %s111 = sadd.s32 %s110, 1
    %p114 = scmp.eq.s32.totalorder %s13, 1
    %p115 = scmp.ne.s32.totalorder %s110, %s112
    %p116 = scmp.eq.s32.totalorder %s13, 0
    %p117 = por %p115, %p116
    %p118 = scmp.ne.s32.totalorder %s110, %s112
    %p119 = scmp.eq.s32.totalorder %s18, 1
    %p120 = por %p118, %p119
    %p121 = scmp.ne.s32.totalorder %s112, %s113
    %p122 = scmp.eq.s32.totalorder %s18, 0
    %p123 = por %p121, %p122
    %p124 = scmp.ne.s32.totalorder %s112, %s113
    %p125 = scmp.eq.s32.totalorder %s19, 1
    %p126 = por %p124, %p125
    %p128 = scmp.ne.s32.totalorder %s113, %s127
    %p129 = scmp.eq.s32.totalorder %s19, 0
    %p130 = por %p128, %p129
    %s132 = sadd.s32 %s131, 1
    %p135 = scmp.eq.s32.totalorder %s13, 1
    %p136 = scmp.ne.s32.totalorder %s131, %s133
    %p137 = scmp.eq.s32.totalorder %s13, 0
    %p138 = por %p136, %p137
    %p139 = scmp.ne.s32.totalorder %s131, %s133
    %p140 = scmp.eq.s32.totalorder %s18, 1
    %p141 = por %p139, %p140
    %p142 = scmp.ne.s32.totalorder %s133, %s134
    %p143 = scmp.eq.s32.totalorder %s18, 0
    %p144 = por %p142, %p143
    %p145 = scmp.ne.s32.totalorder %s133, %s134
    %p146 = scmp.eq.s32.totalorder %s19, 1
    %p147 = por %p145, %p146
    %p149 = scmp.ne.s32.totalorder %s134, %s148
    %p150 = scmp.eq.s32.totalorder %s19, 0
    %p151 = por %p149, %p150
    %s153 = sadd.s32 %s152, 1
    %p156 = scmp.eq.s32.totalorder %s13, 1
    %p157 = scmp.ne.s32.totalorder %s152, %s154
    %p158 = scmp.eq.s32.totalorder %s13, 0
    %p159 = por %p157, %p158
    %p160 = scmp.ne.s32.totalorder %s152, %s154
    %p161 = scmp.eq.s32.totalorder %s18, 1
    %p162 = por %p160, %p161
    %p163 = scmp.ne.s32.totalorder %s154, %s155
    %p164 = scmp.eq.s32.totalorder %s18, 0
    %p165 = por %p163, %p164
    %p166 = scmp.ne.s32.totalorder %s154, %s155
    %p167 = scmp.eq.s32.totalorder %s19, 1
    %p168 = por %p166, %p167
    %p170 = scmp.ne.s32.totalorder %s155, %s169
    %p171 = scmp.eq.s32.totalorder %s19, 0
    %p172 = por %p170, %p171
    %s173 = ssub.s32 %s13, %s20
    %p174 = scmp.eq.s32.totalorder %s173, 0
    %s176 = sadd.s32 %s175, 1
    %s177 = scalar_select %p174, %s175, %s176
    %p180 = pneg %p174
    %p181 = scmp.eq.s32.totalorder %s13, 1
    %p182 = por %p180, %p181
    %p183 = scmp.ne.s32.totalorder %s175, %s178
    %p184 = scmp.eq.s32.totalorder %s13, 0
    %p185 = por %p183, %p184
    %p186 = scmp.ne.s32.totalorder %s175, %s178
    %p187 = scmp.eq.s32.totalorder %s18, 1
    %p188 = por %p186, %p187
    %p189 = scmp.ne.s32.totalorder %s178, %s179
    %p190 = scmp.eq.s32.totalorder %s18, 0
    %p191 = por %p189, %p190
    %p192 = scmp.ne.s32.totalorder %s178, %s179
    %p193 = scmp.eq.s32.totalorder %s19, 1
    %p194 = por %p192, %p193
    %p196 = scmp.ne.s32.totalorder %s179, %s195
    %p197 = scmp.eq.s32.totalorder %s19, 0
    %p198 = por %p196, %p197
    %p199 = scmp.le.s32.totalorder 1, %s13
    %p200 = scmp.lt.s32.totalorder %s13, 3
    %p201 = pnand %p199, %p200
    %p202 = pneg %p201
    // Predicated region
    $region9: #{unet_encoder_block.1} parent=5 // pred_check
      _
    $region10: #{unet_encoder_block.1} parent=5 // pred_check_branch
      %204 = sbr.rel (%p201) target = $region12
    $region11: #{unet_encoder_block.1} parent=5 // pred_region
      %s205 = ssub.s32 %s13, 1
      // Predicated region
      $region13: #{unet_encoder_block.1} parent=11 // pred_check
        %p206 = pneg %p60
      $region14: #{unet_encoder_block.1} parent=11 // pred_check_branch
        %208 = sbr.rel (%p206) target = $region16
      $region15: #{unet_encoder_block.1} parent=11 // pred_region
        _
      $region16: #{unet_encoder_block.1} parent=11 // pred_fallthru
        _
      // Predicated region
      $region17: #{unet_encoder_block.1} parent=11 // pred_check
        %p209 = pneg %p81
      $region18: #{unet_encoder_block.1} parent=11 // pred_check_branch
        %211 = sbr.rel (%p209) target = $region20
      $region19: #{unet_encoder_block.1} parent=11 // pred_region
        _
      $region20: #{unet_encoder_block.1} parent=11 // pred_fallthru
        _
      // Predicated region
      $region21: #{unet_encoder_block.1} parent=11 // pred_check
        %p212 = pneg %p102
      $region22: #{unet_encoder_block.1} parent=11 // pred_check_branch
        %214 = sbr.rel (%p212) target = $region24
      $region23: #{unet_encoder_block.1} parent=11 // pred_region
        _
      $region24: #{unet_encoder_block.1} parent=11 // pred_fallthru
        _
      // Predicated region
      $region25: #{unet_encoder_block.1} parent=11 // pred_check
        %p215 = pneg %p123
      $region26: #{unet_encoder_block.1} parent=11 // pred_check_branch
        %217 = sbr.rel (%p215) target = $region28
      $region27: #{unet_encoder_block.1} parent=11 // pred_region
        _
      $region28: #{unet_encoder_block.1} parent=11 // pred_fallthru
        _
      // Predicated region
      $region29: #{unet_encoder_block.1} parent=11 // pred_check
        %p218 = pneg %p144
      $region30: #{unet_encoder_block.1} parent=11 // pred_check_branch
        %220 = sbr.rel (%p218) target = $region32
      $region31: #{unet_encoder_block.1} parent=11 // pred_region
        _
      $region32: #{unet_encoder_block.1} parent=11 // pred_fallthru
        _
      // Predicated region
      $region33: #{unet_encoder_block.1} parent=11 // pred_check
        %p221 = pneg %p165
      $region34: #{unet_encoder_block.1} parent=11 // pred_check_branch
        %223 = sbr.rel (%p221) target = $region36
      $region35: #{unet_encoder_block.1} parent=11 // pred_region
        _
      $region36: #{unet_encoder_block.1} parent=11 // pred_fallthru
        _
    $region12: #{unet_encoder_block.1} parent=5 // pred_fallthru
      _
    %p224 = scmp.lt.s32.totalorder %s13, 2
    // Predicated region
    $region37: #{unet_encoder_block.1} parent=5 // pred_check
      %p225 = pneg %p224
    $region38: #{unet_encoder_block.1} parent=5 // pred_check_branch
      %227 = sbr.rel (%p225) target = $region40
    $region39: #{unet_encoder_block.1} parent=5 // pred_region
      // Predicated region
      $region41: #{unet_encoder_block.1} parent=39 // pred_check
        %p228 = pneg %p33
      $region42: #{unet_encoder_block.1} parent=39 // pred_check_branch
        %230 = sbr.rel (%p228) target = $region44
      $region43: #{unet_encoder_block.1} parent=39 // pred_region
        %p231 = scmp.lt.s32.totalorder %s13, 1
        %s232 = scalar_select %p231, %s13, 1
        %s233 = smul.addr %s232, 4
        %s234 = smul.addr %s233, 4
        %s235 = scalar_lea.vmem %s0, %s234
      $region44: #{unet_encoder_block.1} parent=39 // pred_fallthru
        _
    $region40: #{unet_encoder_block.1} parent=5 // pred_fallthru
      _
    %p236 = scmp.le.s32.totalorder 1, %s13
    %p237 = scmp.lt.s32.totalorder %s13, 3
    %p238 = pnand %p236, %p237
    %p239 = pneg %p238
    // Predicated region
    $region45: #{unet_encoder_block.1} parent=5 // pred_check
      _
    $region46: #{unet_encoder_block.1} parent=5 // pred_check_branch
      %241 = sbr.rel (%p238) target = $region48
    $region47: #{unet_encoder_block.1} parent=5 // pred_region
      %s242 = ssub.s32 %s13, 1
      %p243 = scmp.lt.s32.totalorder %s18, 1
      %s244 = scalar_select %p243, %s18, 1
      %s245 = smul.addr %s244, 4
      %s246 = smul.addr %s245, 4
      %s247 = scalar_lea.vmem %s0, %s246
      %p248 = pneg %p39
      %p249 = pneg %p36
      %p250 = pneg %p60
      %p251 = pneg %p57
      %p252 = pneg %p81
      %p253 = pneg %p78
      %p254 = pneg %p102
      %p255 = pneg %p99
      %p256 = pneg %p123
      %p257 = pneg %p120
      %p258 = pneg %p144
      %p259 = pneg %p141
      %p260 = pneg %p165
      %p261 = pneg %p162
      %p262 = pneg %p191
      %p263 = pneg %p188
      %p264 = scmp.lt.s32.totalorder %s18, 1
      %s265 = scalar_select %p264, %s18, 1
      %s266 = smul.addr %s265, 8
      %s267 = scalar_lea.vmem %s7, %s266
      %p268 = scmp.lt.s32.totalorder %s18, 1
      %s269 = scalar_select %p268, %s18, 1
      %s270 = smul.addr %s269, 4
      %s271 = smul.addr %s270, 4
      %s272 = scalar_lea.vmem %s0, %s271
      %p273 = scmp.lt.s32.totalorder %s18, 1
      %s274 = scalar_select %p273, %s18, 1
      %s275 = smul.addr %s274, 8
      %s276 = scalar_lea.vmem %s7, %s275
      %v277 = vld [vmem:[%s272] sm:$0xf]
      %v278 = vld [vmem:[%s272 + $0x4] sm:$0xf]
      %v279 = vld [vmem:[%s272 + $0x8] sm:$0xf]
      %v280 = vld [vmem:[%s272 + $0xc] sm:$0xf]
      %v281 = vmax.f32 %v277, 0.0
      %v282 = vmax.f32 %v278, 0.0
      %v283 = vmax.f32 %v279, 0.0
      %v284 = vmax.f32 %v280, 0.0
      %vm285 = vcmask 1048064
      %286 = vrot.lane.b32.xlu0 %v284, 64
      %v287 = vpop.permute.xlu0 %286
      %v288 = vsel %vm285, %v287, %v284
      %289 = vrot.lane.b32.xlu0 %v288, 64
      %v290 = vpop.permute.xlu0 %289
      %v291 = vsel %vm285, %v290, %v284
      %v292 = vld [vmem:[%s3] sm:$0x1]
      %v293 = vlaneseq
      %v294 = vshrl.u32 %v293, 7
      %v295 = vsub.s32 0, %v294
      %v296 = vrot.slane %v292, %v295
      %298 = vrot.lane.b32.xlu0 %v296, 55
      %v299 = vpop.permute.xlu0 %298
      %v301 = vmul.f32 %v291, %v299
      %303 = vrot.lane.b32.xlu0 %v301, 73
      %v304 = vpop.permute.xlu0 %303
      %vm306 = vcmask 519168
      %307 = vst.msk [vmem:[#allocation2] sm:$0xf] %vm306, %v304
      %308 = vrot.lane.b32.xlu0 %v283, 64
      %v309 = vpop.permute.xlu0 %308
      %v310 = vsel %vm285, %v309, %v283
      %311 = vrot.lane.b32.xlu0 %v310, 64
      %v312 = vpop.permute.xlu0 %311
      %v313 = vsel %vm285, %v312, %v283
      %v314 = vld [vmem:[%s3 + $0x1] sm:$0x1]
      %v315 = vlaneseq
      %v316 = vshrl.u32 %v315, 7
      %v317 = vsub.s32 0, %v316
      %v318 = vrot.slane %v314, %v317
      %320 = vrot.lane.b32.xlu0 %v318, 56
      %v321 = vpop.permute.xlu0 %320
      %v323 = vmul.f32 %v313, %v321
      %325 = vrot.lane.b32.xlu0 %v323, 72
      %v326 = vpop.permute.xlu0 %325
      %328 = vst.msk [vmem:[#allocation2 + $0x4] sm:$0xf] %vm306, %v326
      %v329 = vld [vmem:[%s3 + $0x2] sm:$0x1]
      %v330 = vlaneseq
      %v331 = vshrl.u32 %v330, 7
      %v332 = vsub.s32 0, %v331
      %v333 = vrot.slane %v329, %v332
      %335 = vrot.lane.b32.xlu0 %v333, 56
      %v336 = vpop.permute.xlu0 %335
      %v338 = vmul.f32 %v291, %v336
      %340 = vrot.lane.b32.xlu0 %v338, 72
      %v341 = vpop.permute.xlu0 %340
      %343 = vst.msk [vmem:[#allocation2 + $0x8] sm:$0xf] %vm306, %v341
      %v344 = vld [vmem:[%s3 + $0x3] sm:$0x1]
      %v345 = vlaneseq
      %v346 = vshrl.u32 %v345, 7
      %v347 = vsub.s32 0, %v346
      %v348 = vrot.slane %v344, %v347
      %350 = vrot.lane.b32.xlu0 %v348, 57
      %v351 = vpop.permute.xlu0 %350
      %v353 = vmul.f32 %v313, %v351
      %355 = vrot.lane.b32.xlu0 %v353, 71
      %v356 = vpop.permute.xlu0 %355
      %358 = vst.msk [vmem:[#allocation2 + $0xc] sm:$0xf] %vm306, %v356
      %359 = vrot.lane.b32.xlu0 %v282, 64
      %v360 = vpop.permute.xlu0 %359
      %v361 = vsel %vm285, %v360, %v282
      %362 = vrot.lane.b32.xlu0 %v361, 64
      %v363 = vpop.permute.xlu0 %362
      %v364 = vsel %vm285, %v363, %v282
      %v365 = vld [vmem:[%s3 + $0x4] sm:$0x1]
      %v366 = vlaneseq
      %v367 = vshrl.u32 %v366, 7
      %v368 = vsub.s32 0, %v367
      %v369 = vrot.slane %v365, %v368
      %371 = vrot.lane.b32.xlu0 %v369, 63
      %v372 = vpop.permute.xlu0 %371
      %v374 = vmul.f32 %v364, %v372
      %376 = vrot.lane.b32.xlu0 %v374, 65
      %v377 = vpop.permute.xlu0 %376
      %379 = vst.msk [vmem:[#allocation2 + $0x10] sm:$0xf] %vm306, %v377
      %v380 = vld [vmem:[%s3 + $0x5] sm:$0x1]
      %v381 = vlaneseq
      %v382 = vshrl.u32 %v381, 7
      %v383 = vsub.s32 0, %v382
      %v384 = vrot.slane %v380, %v383
      %v385 = vmul.f32 %v281, %v384
      %386 = vst.msk [vmem:[#allocation2 + $0x14] sm:$0xf] %vm306, %v385
      %v387 = vld [vmem:[%s3 + $0x6] sm:$0x1]
      %v388 = vlaneseq
      %v389 = vshrl.u32 %v388, 7
      %v390 = vsub.s32 0, %v389
      %v391 = vrot.slane %v387, %v390
      %v392 = vmul.f32 %v282, %v391
      %393 = vst.msk [vmem:[#allocation2 + $0x18] sm:$0xf] %vm306, %v392
      %394 = vrot.lane.b32.xlu0 %v281, 64
      %v395 = vpop.permute.xlu0 %394
      %v396 = vsel %vm285, %v395, %v281
      %397 = vrot.lane.b32.xlu0 %v396, 64
      %v398 = vpop.permute.xlu0 %397
      %v399 = vsel %vm285, %v398, %v281
      %v400 = vld [vmem:[%s3 + $0x7] sm:$0x1]
      %v401 = vlaneseq
      %v402 = vshrl.u32 %v401, 7
      %v403 = vsub.s32 0, %v402
      %v404 = vrot.slane %v400, %v403
      %406 = vrot.lane.b32.xlu0 %v404, 1
      %v407 = vpop.permute.xlu0 %406
      %v409 = vmul.f32 %v399, %v407
      %411 = vrot.lane.b32.xlu0 %v409, 127
      %v412 = vpop.permute.xlu0 %411
      %414 = vst.msk [vmem:[#allocation2 + $0x1c] sm:$0xf] %vm306, %v412
      %v415 = vld [vmem:[%s3 + $0x8] sm:$0x1]
      %v416 = vlaneseq
      %v417 = vshrl.u32 %v416, 7
      %v418 = vsub.s32 0, %v417
      %v419 = vrot.slane %v415, %v418
      %421 = vrot.lane.b32.xlu0 %v419, 63
      %v422 = vpop.permute.xlu0 %421
      %v424 = vmul.f32 %v291, %v422
      %426 = vrot.lane.b32.xlu0 %v424, 65
      %v427 = vpop.permute.xlu0 %426
      %429 = vst.msk [vmem:[#allocation2 + $0x20] sm:$0xf] %vm306, %v427
      %v430 = vld [vmem:[%s3 + $0x9] sm:$0x1]
      %v431 = vlaneseq
      %v432 = vshrl.u32 %v431, 7
      %v433 = vsub.s32 0, %v432
      %v434 = vrot.slane %v430, %v433
      %v435 = vmul.f32 %v283, %v434
      %436 = vst.msk [vmem:[#allocation2 + $0x24] sm:$0xf] %vm306, %v435
      %v437 = vld [vmem:[%s3 + $0xa] sm:$0x1]
      %v438 = vlaneseq
      %v439 = vshrl.u32 %v438, 7
      %v440 = vsub.s32 0, %v439
      %v441 = vrot.slane %v437, %v440
      %v442 = vmul.f32 %v284, %v441
      %443 = vst.msk [vmem:[#allocation2 + $0x28] sm:$0xf] %vm306, %v442
      %v444 = vld [vmem:[%s3 + $0xb] sm:$0x1]
      %v445 = vlaneseq
      %v446 = vshrl.u32 %v445, 7
      %v447 = vsub.s32 0, %v446
      %v448 = vrot.slane %v444, %v447
      %450 = vrot.lane.b32.xlu0 %v448, 1
      %v451 = vpop.permute.xlu0 %450
      %v453 = vmul.f32 %v313, %v451
      %455 = vrot.lane.b32.xlu0 %v453, 127
      %v456 = vpop.permute.xlu0 %455
      %458 = vst.msk [vmem:[#allocation2 + $0x2c] sm:$0xf] %vm306, %v456
      %v459 = vld [vmem:[%s3 + $0xc] sm:$0x1]
      %v460 = vlaneseq
      %v461 = vshrl.u32 %v460, 7
      %v462 = vsub.s32 0, %v461
      %v463 = vrot.slane %v459, %v462
      %465 = vrot.lane.b32.xlu0 %v463, 7
      %v466 = vpop.permute.xlu0 %465
      %v468 = vmul.f32 %v364, %v466
      %470 = vrot.lane.b32.xlu0 %v468, 121
      %v471 = vpop.permute.xlu0 %470
      %473 = vst.msk [vmem:[#allocation2 + $0x30] sm:$0xf] %vm306, %v471
      %v474 = vld [vmem:[%s3 + $0xd] sm:$0x1]
      %v475 = vlaneseq
      %v476 = vshrl.u32 %v475, 7
      %v477 = vsub.s32 0, %v476
      %v478 = vrot.slane %v474, %v477
      %480 = vrot.lane.b32.xlu0 %v478, 8
      %v481 = vpop.permute.xlu0 %480
      %v483 = vmul.f32 %v399, %v481
      %485 = vrot.lane.b32.xlu0 %v483, 120
      %v486 = vpop.permute.xlu0 %485
      %488 = vst.msk [vmem:[#allocation2 + $0x34] sm:$0xf] %vm306, %v486
      %v489 = vld [vmem:[%s3 + $0xe] sm:$0x1]
      %v490 = vlaneseq
      %v491 = vshrl.u32 %v490, 7
      %v492 = vsub.s32 0, %v491
      %v493 = vrot.slane %v489, %v492
      %495 = vrot.lane.b32.xlu0 %v493, 8
      %v496 = vpop.permute.xlu0 %495
      %v498 = vmul.f32 %v364, %v496
      %500 = vrot.lane.b32.xlu0 %v498, 120
      %v501 = vpop.permute.xlu0 %500
      %503 = vst.msk [vmem:[#allocation2 + $0x38] sm:$0xf] %vm306, %v501
      %v504 = vld [vmem:[%s3 + $0xf] sm:$0x1]
      %v505 = vlaneseq
      %v506 = vshrl.u32 %v505, 7
      %v507 = vsub.s32 0, %v506
      %v508 = vrot.slane %v504, %v507
      %510 = vrot.lane.b32.xlu0 %v508, 9
      %v511 = vpop.permute.xlu0 %510
      %v513 = vmul.f32 %v399, %v511
      %515 = vrot.lane.b32.xlu0 %v513, 119
      %v516 = vpop.permute.xlu0 %515
      %518 = vst.msk [vmem:[#allocation2 + $0x3c] sm:$0xf] %vm306, %v516
      %v519 = vld [vmem:[%s1] sm:$0xff]
      %v520 = vld [vmem:[#allocation2] sm:$0xff]
      %v521 = vld [vmem:[#allocation2 + $0x8] sm:$0xff]
      %v522 = vld [vmem:[#allocation2 + $0x10] sm:$0xff]
      %v523 = vld [vmem:[#allocation2 + $0x18] sm:$0xff]
      %v524 = vld [vmem:[#allocation2 + $0x20] sm:$0xff]
      %v525 = vld [vmem:[#allocation2 + $0x28] sm:$0xff]
      %v526 = vld [vmem:[#allocation2 + $0x30] sm:$0xff]
      %v527 = vld [vmem:[#allocation2 + $0x38] sm:$0xff]
      %v528 = vld [vmem:[%s2] sm:$0xff]
      %530 = vset.pattern.permute.xlu0 0
      %531 = vperm.xlu0 %530, %v528
      %v532 = vpop.permute.xlu0 %531
      %vm534 = vcmask 523264
      %v536 = vsel %vm534, %v519, 0
      %538 = vmatprep.subr.mxu0 0.0
      %539 = vmatpush1.msra.mxu0 %v520
      %540 = vmatprep.subr.mxu0 0.0
      %541 = vmatpush1.msra.mxu0 %v521
      %542 = vmatprep.subr.mxu0 0.0
      %543 = vmatpush1.msra.mxu0 %v522
      %544 = vmatprep.subr.mxu0 0.0
      %545 = vmatpush1.msra.mxu0 %v523
      %546 = vmatprep.subr.mxu0 0.0
      %547 = vmatpush1.msra.mxu0 %v524
      %548 = vmatprep.subr.mxu0 0.0
      %549 = vmatpush1.msra.mxu0 %v525
      %550 = vmatprep.subr.mxu0 0.0
      %551 = vmatpush1.msra.mxu0 %v526
      %552 = vmatprep.subr.mxu0 0.0
      %553 = vmatpush1.msra.mxu0 %v527
      %554 = vmatprep.subr.mxu0 0.0
      %555 = vmatpush1.msra.mxu0 0.0
      %556 = vmatprep.subr.mxu0 0.0
      %557 = vmatpush1.msra.mxu0 0.0
      %558 = vmatprep.subr.mxu0 0.0
      %559 = vmatpush1.msra.mxu0 0.0
      %560 = vmatprep.subr.mxu0 0.0
      %561 = vmatpush1.msra.mxu0 0.0
      %562 = vmatprep.subr.mxu0 0.0
      %563 = vmatpush1.msra.mxu0 0.0
      %564 = vmatprep.subr.mxu0 0.0
      %565 = vmatpush1.msra.mxu0 0.0
      %566 = vmatprep.subr.mxu0 0.0
      %567 = vmatpush1.msra.mxu0 0.0
      %568 = vmatprep.subr.mxu0 0.0
      %569 = vmatpush1.msra.mxu0 0.0
      %570 = vmatprep.subr.mxu0 0.0
      %571 = vmatpush1.msra.mxu0 0.0
      %572 = vmatprep.subr.mxu0 0.0
      %573 = vmatpush1.msra.mxu0 0.0
      %574 = vmatprep.subr.mxu0 0.0
      %575 = vmatpush1.msra.mxu0 0.0
      %576 = vmatprep.subr.mxu0 0.0
      %577 = vmatpush1.msra.mxu0 0.0
      %578 = vmatprep.subr.mxu0 0.0
      %579 = vmatpush1.msra.mxu0 0.0
      %580 = vmatprep.subr.mxu0 0.0
      %581 = vmatpush1.msra.mxu0 0.0
      %582 = vmatprep.subr.mxu0 0.0
      %583 = vmatpush1.msra.mxu0 0.0
      %584 = vmatprep.subr.mxu0 0.0
      %585 = vmatpush1.msra.mxu0 0.0
      %586 = vmatprep.subr.mxu0 0.0
      %587 = vmatpush1.msra.mxu0 0.0
      %588 = vmatprep.subr.mxu0 0.0
      %589 = vmatpush1.msra.mxu0 0.0
      %590 = vmatprep.subr.mxu0 0.0
      %591 = vmatpush1.msra.mxu0 0.0
      %592 = vmatprep.subr.mxu0 0.0
      %593 = vmatpush1.msra.mxu0 0.0
      %594 = vmatprep.subr.mxu0 0.0
      %595 = vmatpush1.msra.mxu0 0.0
      %596 = vmatprep.subr.mxu0 0.0
      %597 = vmatpush1.msra.mxu0 0.0
      %598 = vmatprep.subr.mxu0 0.0
      %599 = vmatpush1.msra.mxu0 0.0
      %600 = vmatprep.subr.mxu0 0.0
      %601 = vmatpush1.msra.mxu0 0.0
      %602 = vmatprep.mubr.f32.mxu0 0.0
      %603 = vmatmul.mubr.f32.gmra.mrb[0].mxu0 %v536
      %v604 = vpop.f32.mrb[0].mxu0
      %v605 = vadd.f32 %v532, %v604
      %v606 = vpop.f32.mrb[0].mxu0
      %607 = vdwg.mxu0
      %v608 = vsel %vm534, %v605, 0.0
      %609 = vadd.xlane.f32.xlu0 %v608
      %v610 = vpop.xlane.xlu0 %609
      %v611 = vrcp.pop 64.0
      %v612 = vmul.f32 %v610, %v611
      %v613 = vsub.f32 %v605, %v612
      %v614 = vmul.f32 %v613, %v613
      %v615 = vsel %vm534, %v614, 0.0
      %616 = vadd.xlane.f32.xlu0 %v615
      %v617 = vpop.xlane.xlu0 %616
      %v618 = vmul.f32 %v617, %v611
      %v619 = vadd.f32 %v618, 1e-05
      %v620 = vrsqrt.pop %v619
      %v621 = vmul.f32 %v613, %v620
      %v622 = vmax.f32 %v621, 0.0
      %623 = vrot.lane.b32.xlu0 %v622, 64
      %v624 = vpop.permute.xlu0 %623
      %v625 = vsel %vm285, %v624, %v622
      %626 = vrot.lane.b32.xlu0 %v625, 64
      %v627 = vpop.permute.xlu0 %626
      %v628 = vsel %vm285, %v627, %v622
      %v629 = vld [vmem:[%s6] sm:$0x1]
      %v630 = vlaneseq
      %v631 = vshrl.u32 %v630, 7
      %v632 = vsub.s32 0, %v631
      %v633 = vrot.slane %v629, %v632
      %635 = vrot.lane.b32.xlu0 %v633, 55
      %v636 = vpop.permute.xlu0 %635
      %v638 = vmul.f32 %v628, %v636
      %640 = vrot.lane.b32.xlu0 %v638, 73
      %v641 = vpop.permute.xlu0 %640
      %643 = vst.msk [vmem:[#allocation3] sm:$0xff] %vm534, %v641
      %v644 = vld [vmem:[%s6 + $0x1] sm:$0x1]
      %v645 = vlaneseq
      %v646 = vshrl.u32 %v645, 7
      %v647 = vsub.s32 0, %v646
      %v648 = vrot.slane %v644, %v647
      %650 = vrot.lane.b32.xlu0 %v648, 56
      %v651 = vpop.permute.xlu0 %650
      %v653 = vmul.f32 %v628, %v651
      %655 = vrot.lane.b32.xlu0 %v653, 72
      %v656 = vpop.permute.xlu0 %655
      %658 = vst.msk [vmem:[#allocation3 + $0x8] sm:$0xff] %vm534, %v656
      %v659 = vld [vmem:[%s6 + $0x2] sm:$0x1]
      %v660 = vlaneseq
      %v661 = vshrl.u32 %v660, 7
      %v662 = vsub.s32 0, %v661
      %v663 = vrot.slane %v659, %v662
      %665 = vrot.lane.b32.xlu0 %v663, 57
      %v666 = vpop.permute.xlu0 %665
      %v668 = vmul.f32 %v628, %v666
      %670 = vrot.lane.b32.xlu0 %v668, 71
      %v671 = vpop.permute.xlu0 %670
      %673 = vst.msk [vmem:[#allocation3 + $0x10] sm:$0xff] %vm534, %v671
      %v674 = vld [vmem:[%s6 + $0x3] sm:$0x1]
      %v675 = vlaneseq
      %v676 = vshrl.u32 %v675, 7
      %v677 = vsub.s32 0, %v676
      %v678 = vrot.slane %v674, %v677
      %680 = vrot.lane.b32.xlu0 %v678, 63
      %v681 = vpop.permute.xlu0 %680
      %v683 = vmul.f32 %v628, %v681
      %685 = vrot.lane.b32.xlu0 %v683, 65
      %v686 = vpop.permute.xlu0 %685
      %688 = vst.msk [vmem:[#allocation3 + $0x18] sm:$0xff] %vm534, %v686
      %v689 = vld [vmem:[%s6 + $0x4] sm:$0x1]
      %v690 = vlaneseq
      %v691 = vshrl.u32 %v690, 7
      %v692 = vsub.s32 0, %v691
      %v693 = vrot.slane %v689, %v692
      %v694 = vmul.f32 %v622, %v693
      %695 = vst.msk [vmem:[#allocation3 + $0x20] sm:$0xff] %vm534, %v694
      %v696 = vld [vmem:[%s6 + $0x5] sm:$0x1]
      %v697 = vlaneseq
      %v698 = vshrl.u32 %v697, 7
      %v699 = vsub.s32 0, %v698
      %v700 = vrot.slane %v696, %v699
      %702 = vrot.lane.b32.xlu0 %v700, 1
      %v703 = vpop.permute.xlu0 %702
      %v705 = vmul.f32 %v628, %v703
      %707 = vrot.lane.b32.xlu0 %v705, 127
      %v708 = vpop.permute.xlu0 %707
      %710 = vst.msk [vmem:[#allocation3 + $0x28] sm:$0xff] %vm534, %v708
      %v711 = vld [vmem:[%s6 + $0x6] sm:$0x1]
      %v712 = vlaneseq
      %v713 = vshrl.u32 %v712, 7
      %v714 = vsub.s32 0, %v713
      %v715 = vrot.slane %v711, %v714
      %717 = vrot.lane.b32.xlu0 %v715, 7
      %v718 = vpop.permute.xlu0 %717
      %v720 = vmul.f32 %v628, %v718
      %722 = vrot.lane.b32.xlu0 %v720, 121
      %v723 = vpop.permute.xlu0 %722
      %725 = vst.msk [vmem:[#allocation3 + $0x30] sm:$0xff] %vm534, %v723
      %v726 = vld [vmem:[%s6 + $0x7] sm:$0x1]
      %v727 = vlaneseq
      %v728 = vshrl.u32 %v727, 7
      %v729 = vsub.s32 0, %v728
      %v730 = vrot.slane %v726, %v729
      %732 = vrot.lane.b32.xlu0 %v730, 8
      %v733 = vpop.permute.xlu0 %732
      %v735 = vmul.f32 %v628, %v733
      %737 = vrot.lane.b32.xlu0 %v735, 120
      %v738 = vpop.permute.xlu0 %737
      %740 = vst.msk [vmem:[#allocation3 + $0x38] sm:$0xff] %vm534, %v738
      %v741 = vld [vmem:[%s6 + $0x8] sm:$0x1]
      %v742 = vlaneseq
      %v743 = vshrl.u32 %v742, 7
      %v744 = vsub.s32 0, %v743
      %v745 = vrot.slane %v741, %v744
      %747 = vrot.lane.b32.xlu0 %v745, 9
      %v748 = vpop.permute.xlu0 %747
      %v750 = vmul.f32 %v628, %v748
      %752 = vrot.lane.b32.xlu0 %v750, 119
      %v753 = vpop.permute.xlu0 %752
      %755 = vst.msk [vmem:[#allocation3 + $0x40] sm:$0xff] %vm534, %v753
      %v756 = vld [vmem:[%s4] sm:$0xff]
      %v757 = vld [vmem:[#allocation3] sm:$0xff]
      %v758 = vld [vmem:[#allocation3 + $0x8] sm:$0xff]
      %v759 = vld [vmem:[#allocation3 + $0x10] sm:$0xff]
      %v760 = vld [vmem:[#allocation3 + $0x18] sm:$0xff]
      %v761 = vld [vmem:[#allocation3 + $0x20] sm:$0xff]
      %v762 = vld [vmem:[#allocation3 + $0x28] sm:$0xff]
      %v763 = vld [vmem:[#allocation3 + $0x30] sm:$0xff]
      %v764 = vld [vmem:[#allocation3 + $0x38] sm:$0xff]
      %v765 = vld [vmem:[#allocation3 + $0x40] sm:$0xff]
      %v766 = vld [vmem:[%s5] sm:$0xff]
      %768 = vset.pattern.permute.xlu0 0
      %769 = vperm.xlu0 %768, %v766
      %v770 = vpop.permute.xlu0 %769
      %vm772 = vcmask 588800
      %v774 = vsel %vm772, %v756, 0
      %776 = vmatprep.subr.mxu0 0.0
      %777 = vmatpush1.msra.mxu0 %v757
      %778 = vmatprep.subr.mxu0 0.0
      %779 = vmatpush1.msra.mxu0 %v758
      %780 = vmatprep.subr.mxu0 0.0
      %781 = vmatpush1.msra.mxu0 %v759
      %782 = vmatprep.subr.mxu0 0.0
      %783 = vmatpush1.msra.mxu0 %v760
      %784 = vmatprep.subr.mxu0 0.0
      %785 = vmatpush1.msra.mxu0 %v761
      %786 = vmatprep.subr.mxu0 0.0
      %787 = vmatpush1.msra.mxu0 %v762
      %788 = vmatprep.subr.mxu0 0.0
      %789 = vmatpush1.msra.mxu0 %v763
      %790 = vmatprep.subr.mxu0 0.0
      %791 = vmatpush1.msra.mxu0 %v764
      %792 = vmatprep.subr.mxu0 0.0
      %793 = vmatpush1.msra.mxu0 %v765
      %794 = vmatprep.subr.mxu0 0.0
      %795 = vmatpush1.msra.mxu0 0.0
      %796 = vmatprep.subr.mxu0 0.0
      %797 = vmatpush1.msra.mxu0 0.0
      %798 = vmatprep.subr.mxu0 0.0
      %799 = vmatpush1.msra.mxu0 0.0
      %800 = vmatprep.subr.mxu0 0.0
      %801 = vmatpush1.msra.mxu0 0.0
      %802 = vmatprep.subr.mxu0 0.0
      %803 = vmatpush1.msra.mxu0 0.0
      %804 = vmatprep.subr.mxu0 0.0
      %805 = vmatpush1.msra.mxu0 0.0
      %806 = vmatprep.subr.mxu0 0.0
      %807 = vmatpush1.msra.mxu0 0.0
      %808 = vmatprep.subr.mxu0 0.0
      %809 = vmatpush1.msra.mxu0 0.0
      %810 = vmatprep.subr.mxu0 0.0
      %811 = vmatpush1.msra.mxu0 0.0
      %812 = vmatprep.subr.mxu0 0.0
      %813 = vmatpush1.msra.mxu0 0.0
      %814 = vmatprep.subr.mxu0 0.0
      %815 = vmatpush1.msra.mxu0 0.0
      %816 = vmatprep.subr.mxu0 0.0
      %817 = vmatpush1.msra.mxu0 0.0
      %818 = vmatprep.subr.mxu0 0.0
      %819 = vmatpush1.msra.mxu0 0.0
      %820 = vmatprep.subr.mxu0 0.0
      %821 = vmatpush1.msra.mxu0 0.0
      %822 = vmatprep.subr.mxu0 0.0
      %823 = vmatpush1.msra.mxu0 0.0
      %824 = vmatprep.subr.mxu0 0.0
      %825 = vmatpush1.msra.mxu0 0.0
      %826 = vmatprep.subr.mxu0 0.0
      %827 = vmatpush1.msra.mxu0 0.0
      %828 = vmatprep.subr.mxu0 0.0
      %829 = vmatpush1.msra.mxu0 0.0
      %830 = vmatprep.subr.mxu0 0.0
      %831 = vmatpush1.msra.mxu0 0.0
      %832 = vmatprep.subr.mxu0 0.0
      %833 = vmatpush1.msra.mxu0 0.0
      %834 = vmatprep.subr.mxu0 0.0
      %835 = vmatpush1.msra.mxu0 0.0
      %836 = vmatprep.subr.mxu0 0.0
      %837 = vmatpush1.msra.mxu0 0.0
      %838 = vmatprep.subr.mxu0 0.0
      %839 = vmatpush1.msra.mxu0 0.0
      %840 = vmatprep.mubr.f32.mxu0 0.0
      %841 = vmatmul.mubr.f32.gmra.mrb[0].mxu0 %v774
      %v842 = vpop.f32.mrb[0].mxu0
      %v843 = vadd.f32 %v770, %v842
      %v844 = vpop.f32.mrb[0].mxu0
      %845 = vdwg.mxu0
      %v846 = vsel %vm534, %v843, 0.0
      %847 = vadd.xlane.f32.xlu0 %v846
      %v848 = vpop.xlane.xlu0 %847
      %v849 = vmul.f32 %v848, %v611
      %v850 = vsub.f32 %v843, %v849
      %v851 = vmul.f32 %v850, %v850
      %v852 = vsel %vm534, %v851, 0.0
      %853 = vadd.xlane.f32.xlu0 %v852
      %v854 = vpop.xlane.xlu0 %853
      %v855 = vmul.f32 %v854, %v611
      %v856 = vadd.f32 %v855, 1e-05
      %v857 = vrsqrt.pop %v856
      %v858 = vmul.f32 %v850, %v857
      %859 = vst.msk [vmem:[%s276] sm:$0xff] %vm534, %v858
      %p860 = scmp.lt.s32.totalorder %s18, 1
      %s861 = scalar_select %p860, %s18, 1
      %s862 = smul.addr %s861, 8
      %s863 = scalar_lea.vmem %s7, %s862
      // Predicated region
      $region49: #{unet_encoder_block.1} parent=47 // pred_check
        %p864 = pneg %p188
      $region50: #{unet_encoder_block.1} parent=47 // pred_check_branch
        %866 = sbr.rel (%p864) target = $region52
      $region51: #{unet_encoder_block.1} parent=47 // pred_region
        _
      $region52: #{unet_encoder_block.1} parent=47 // pred_fallthru
        _
    $region48: #{unet_encoder_block.1} parent=5 // pred_fallthru
      _
    %p867 = scmp.le.s32.totalorder 2, %s13
    // Predicated region
    $region53: #{unet_encoder_block.1} parent=5 // pred_check
      %p868 = pneg %p867
    $region54: #{unet_encoder_block.1} parent=5 // pred_check_branch
      %870 = sbr.rel (%p868) target = $region56
    $region55: #{unet_encoder_block.1} parent=5 // pred_region
      %s871 = ssub.s32 %s13, 2
      // Predicated region
      $region57: #{unet_encoder_block.1} parent=55 // pred_check
        %p872 = pneg %p194
      $region58: #{unet_encoder_block.1} parent=55 // pred_check_branch
        %874 = sbr.rel (%p872) target = $region60
      $region59: #{unet_encoder_block.1} parent=55 // pred_region
        %p875 = scmp.lt.s32.totalorder %s19, 1
        %s876 = scalar_select %p875, %s19, 1
        %s877 = smul.addr %s876, 8
        %s878 = scalar_lea.vmem %s7, %s877
      $region60: #{unet_encoder_block.1} parent=55 // pred_fallthru
        _
    $region56: #{unet_encoder_block.1} parent=5 // pred_fallthru
      _
  $region6: #{unet_encoder_block.1} parent=0 // loop_footer
    %s17 = sadd.s32 1, %s13
  $region7: #{unet_encoder_block.1} parent=0 // loop_footer_branch
    %12 = sbr.rel target = $region3
  $region8: #{unet_encoder_block.1} parent=0 // loop_exit
    _

</llo_original>
